<compile_context>
chip_gen: v5e
topology: v5e:2x2
jax: 0.10.0
libtpu: 0.0.40
codegen_flags: <defaults>
</compile_context>

<pallas_src>
import functools
import math

import jax
import jax.numpy as jnp
from jax.experimental import pallas as pl
from jax.experimental.pallas import tpu as pltpu


def _round_up(x, m):
    return ((x + m - 1) // m) * m


def _cdiv(a, b):
    return -(-a // b)


def _split_hi_lo(v_f32):
    """2-way bf16 split: v ~= hi + lo with ~2^-17 relative error."""
    hi = v_f32.astype(jnp.bfloat16)
    lo = (v_f32 - hi.astype(jnp.float32)).astype(jnp.bfloat16)
    return hi, lo


def _epilogue(o_ref, x_ref, w_ref, b_ref, x_f32, e, inv_std):
    # addcmul(bias, scale, normalized) == bias + scale * normalized
    if o_ref.dtype == jnp.bfloat16:
        # bf16 epilogue: halves work on the VALU slot (v6e/v7x bf16 VPU).
        cd = jnp.bfloat16
        xn = (x_ref[...].astype(cd) - e.astype(cd)) * inv_std.astype(cd)
        o_ref[...] = b_ref[...].astype(cd) + w_ref[...].astype(cd) * xn
    else:
        xn = (x_f32 - e) * inv_std
        o_ref[...] = (b_ref[...].astype(jnp.float32)
                      + w_ref[...].astype(jnp.float32) * xn).astype(o_ref.dtype)


def _layernorm2d_rowwise_kernel(x_ref, w_ref, b_ref, o_ref, *, h, eps):
    # Lane path: H is the (full) lane axis, one logical row per tile row.
    x = x_ref[...].astype(jnp.float32)                   # (T, H)
    inv_n = 1.0 / h                                      # constant multiply, no divide
    e = jnp.sum(x, axis=-1, keepdims=True) * inv_n
    var = jnp.sum(x * x, axis=-1, keepdims=True) * inv_n - e * e
    var = jnp.maximum(var, 0.0)                          # guard E[x^2]-E[x]^2 cancellation
    inv_std = jax.lax.rsqrt(var + eps)                   # single EUP op
    _epilogue(o_ref, x_ref, w_ref, b_ref, x, e, inv_std)


def _layernorm2d_packed_kernel(x_ref, w_ref, b_ref, m_ref, o_ref, *, h, eps,
                               precise):
    # Packed path for H < 128: each tile row holds G = width // H logical rows,
    # each occupying H consecutive lanes.  Per-segment sums (already broadcast
    # back per lane) come from MXU matmuls against a resident 0/1 block-diagonal
    # segment-indicator matrix (bf16, exact); scaling by 1/H happens in f32.
    x = x_ref[...].astype(jnp.float32)                   # (T, W), W % 128 == 0
    m = m_ref[...]                                       # (W, W) bf16, 0/1
    inv_n = 1.0 / h

    if precise:
        # hi/lo split -> ~f32-accurate segment sums (2 MXU passes per moment).
        x_hi, x_lo = _split_hi_lo(x)
        y = x * x
        y_hi, y_lo = _split_hi_lo(y)
        s1 = (jnp.dot(x_hi, m, preferred_element_type=jnp.float32)
              + jnp.dot(x_lo, m, preferred_element_type=jnp.float32))
        s2 = (jnp.dot(y_hi, m, preferred_element_type=jnp.float32)
              + jnp.dot(y_lo, m, preferred_element_type=jnp.float32))
    else:
        xb = x.astype(jnp.bfloat16)
        s1 = jnp.dot(xb, m, preferred_element_type=jnp.float32)
        s2 = jnp.dot((x * x).astype(jnp.bfloat16), m,
                     preferred_element_type=jnp.float32)

    e = s1 * inv_n
    m2 = s2 * inv_n
    var = jnp.maximum(m2 - e * e, 0.0)
    inv_std = jax.lax.rsqrt(var + eps)
    _epilogue(o_ref, x_ref, w_ref, b_ref, x, e, inv_std)


def _pick_sizes():
    """Per-generation block target / vmem limit (v7x has only 64 MiB VMEM)."""
    try:
        vmem_cap = int(pltpu.get_tpu_info().vmem_capacity_bytes)
    except Exception:
        vmem_cap = 64 * 1024 * 1024
    if vmem_cap >= 96 * 1024 * 1024:      # v5e / v6e (128 MiB VMEM)
        return 4 << 20, 64 << 20
    return 2 << 20, 36 << 20              # v7x (64 MiB) or unknown: stay safe


def layernorm_2d(x, weight, bias=None, *, eps=1e-5, precise_stats=True,
                 block_target_bytes=None, vmem_limit_bytes=None):
    """x: (..., H); weight, bias: (H,) (bias may be None). Same shape/dtype out."""
    orig_shape = x.shape
    h = orig_shape[-1]
    rows = int(math.prod(orig_shape[:-1])) if len(orig_shape) > 1 else 1
    x2 = x.reshape(rows, h)

    if bias is None:
        bias = jnp.zeros((h,), dtype=weight.dtype)

    if block_target_bytes is None or vmem_limit_bytes is None:
        bt, vl = _pick_sizes()
        block_target_bytes = block_target_bytes or bt
        vmem_limit_bytes = vmem_limit_bytes or vl

    # Lane-dense packing for small H: fold g = lcm(H,128)/H logical rows into
    # one lane-dense row (width multiple of 128) so loads/stores/VPU avoid
    # masked partial vector ops.  Cap width to bound the segment-matmul cost.
    g = 1
    if h < 128:
        w_lcm = (h * 128) // math.gcd(h, 128)
        if w_lcm <= 384:
            g = w_lcm // h
    width = g * h

    # Pad only to a multiple of g (0..g-1 rows); no full-tile padding.
    rows_g = _round_up(rows, g)
    if rows_g != rows:
        x2 = jnp.pad(x2, ((0, rows_g - rows), (0, 0)))
    packed_rows = rows_g // g
    xp = x2.reshape(packed_rows, width)                  # contiguous -> free reshape

    w2 = weight.reshape(1, h)
    b2 = bias.reshape(1, h)
    if g > 1:
        w2 = jnp.tile(w2, (1, g))
        b2 = jnp.tile(b2, (1, g))

    # Balanced, dtype-aware row tiling; ragged last tile handled by Pallas
    # (OOB reads are per-row garbage that never mixes with valid rows; OOB
    # writes are masked).
    itemsize = jnp.dtype(x.dtype).itemsize
    tile_max = max(8, (block_target_bytes // (itemsize * width)) // 8 * 8)
    n_tiles = _cdiv(packed_rows, tile_max)
    tile_rows = min(tile_max, _round_up(_cdiv(packed_rows, n_tiles), 8))
    grid = (_cdiv(packed_rows, tile_rows),)

    x_spec = pl.BlockSpec((tile_rows, width), lambda i: (i, 0))
    wb_spec = pl.BlockSpec((1, width), lambda i: (0, 0))   # constant index -> resident
    out_spec = pl.BlockSpec((tile_rows, width), lambda i: (i, 0))
    common = dict(
        out_shape=jax.ShapeDtypeStruct((packed_rows, width), x.dtype),
        grid=grid,
        out_specs=out_spec,
        compiler_params=pltpu.CompilerParams(
            dimension_semantics=("parallel",),   # lets v7x split rows across 2 TCs
            vmem_limit_bytes=vmem_limit_bytes,
        ),
    )

    if g > 1:
        # 0/1 block-diagonal segment indicator (exact in bf16), resident in VMEM.
        seg = jnp.arange(width) // h
        m_seg = (seg[:, None] == seg[None, :]).astype(jnp.bfloat16)
        kernel = functools.partial(_layernorm2d_packed_kernel, h=h, eps=eps,
                                   precise=precise_stats)
        out = pl.pallas_call(
            kernel,
            in_specs=[x_spec, wb_spec, wb_spec,
                      pl.BlockSpec((width, width), lambda i: (0, 0))],
            **common,
        )(xp, w2, b2, m_seg)
    else:
        kernel = functools.partial(_layernorm2d_rowwise_kernel, h=h, eps=eps)
        out = pl.pallas_call(
            kernel,
            in_specs=[x_spec, wb_spec, wb_spec],
            **common,
        )(xp, w2, b2)

    out = out.reshape(rows_g, h)
    if rows_g != rows:
        out = out[:rows]                  # only the tiny g-pad, not a tile pad
    return out.reshape(orig_shape)


def _reference(x, w, b, n, eps):
    xf = x.astype(jnp.float32)
    e = jnp.sum(xf, axis=-1, keepdims=True) / n
    v = jnp.sum(xf * xf, axis=-1, keepdims=True) / n - e * e
    return b.astype(jnp.float32) + w.astype(jnp.float32) * ((xf - e) / jnp.sqrt(v + eps))


if __name__ == "__main__":
    eps = 1e-5
    key = jax.random.PRNGKey(0)
    k1, k2, k3 = jax.random.split(key, 3)

    # 1) Packed lane-dense path (H = 32 < 128), float32, module-default params
    #    (Parameter(torch.ones) / Parameter(torch.zeros)).
    h1 = 32
    x1 = jax.random.normal(k1, (2, 16, h1), dtype=jnp.float32)
    w1 = jnp.ones((h1,), jnp.float32)
    b1 = jnp.zeros((h1,), jnp.float32)
    o1 = jax.block_until_ready(layernorm_2d(x1, w1, b1, eps=eps))
    r1 = _reference(x1, w1, b1, h1, eps)
    assert o1.shape == x1.shape and o1.dtype == x1.dtype
    assert float(jnp.max(jnp.abs(o1.astype(jnp.float32) - r1))) < 1e-4

    # 2) Row-wise path (H = 256), ragged row count (exercises partial last tile).
    h2 = 256
    x2 = jax.random.normal(k2, (50, h2), dtype=jnp.float32)
    w2 = 1.0 + 0.1 * jax.random.normal(k3, (h2,), dtype=jnp.float32)
    b2 = 0.05 * jax.random.normal(k1, (h2,), dtype=jnp.float32)
    o2 = jax.block_until_ready(layernorm_2d(x2, w2, b2, eps=eps))
    r2 = _reference(x2, w2, b2, h2, eps)
    assert o2.shape == x2.shape and o2.dtype == x2.dtype
    assert float(jnp.max(jnp.abs(o2 - r2))) < 1e-4

    # 3) Packed path with bf16 in/out (bf16 epilogue) + g-padding + ragged tile.
    x3 = jax.random.normal(k3, (2, 7, h1), dtype=jnp.float32).astype(jnp.bfloat16)
    o3 = jax.block_until_ready(layernorm_2d(x3, w1, b1, eps=eps))
    r3 = _reference(x3, w1, b1, h1, eps)
    assert o3.shape == x3.shape and o3.dtype == jnp.bfloat16
    assert float(jnp.max(jnp.abs(o3.astype(jnp.float32) - r3))) < 6e-2

    print("KERNEL_OK")
</pallas_src>

<mosaic_0001>
module attributes {stable_mosaic.version = 11 : i64} {
  func.func @_layernorm2d_packed_kernel(%arg0: i32, %arg1: memref<8x128xf32, #tpu.memory_space<vmem>>, %arg2: memref<1x128xf32, #tpu.memory_space<vmem>>, %arg3: memref<1x128xf32, #tpu.memory_space<vmem>>, %arg4: memref<128x128xbf16, #tpu.memory_space<vmem>>, %arg5: memref<8x128xf32, #tpu.memory_space<vmem>>) attributes {dimension_semantics = [#tpu.dimension_semantics<parallel>], iteration_bounds = array<i64: 1>, scalar_prefetch = 0 : i64, scratch_operands = 0 : i64, tpu.core_type = #tpu.core_type<tc>, window_params = [{transform_indices = @transform_0, window_bounds = array<i64: 8, 128>}, {pipeline_mode = #tpu.pipeline_mode<synchronous>, transform_indices = @transform_1, window_bounds = array<i64: 1, 128>}, {pipeline_mode = #tpu.pipeline_mode<synchronous>, transform_indices = @transform_2, window_bounds = array<i64: 1, 128>}, {pipeline_mode = #tpu.pipeline_mode<synchronous>, transform_indices = @transform_3, window_bounds = array<i64: 128, 128>}, {transform_indices = @transform_4, window_bounds = array<i64: 8, 128>}]} {
    %c0 = arith.constant 0 : index
    %c0_0 = arith.constant 0 : index
    %0 = vector.load %arg1[%c0, %c0_0] : memref<8x128xf32, #tpu.memory_space<vmem>>, vector<8x128xf32>
    %c0_1 = arith.constant 0 : index
    %c0_2 = arith.constant 0 : index
    %1 = vector.load %arg4[%c0_1, %c0_2] : memref<128x128xbf16, #tpu.memory_space<vmem>>, vector<128x128xbf16>
    %2 = arith.truncf %0 : vector<8x128xf32> to vector<8x128xbf16>
    %3 = arith.extf %2 : vector<8x128xbf16> to vector<8x128xf32>
    %4 = arith.subf %0, %3 : vector<8x128xf32>
    %5 = arith.truncf %4 : vector<8x128xf32> to vector<8x128xbf16>
    %6 = arith.mulf %0, %0 : vector<8x128xf32>
    %7 = arith.truncf %6 : vector<8x128xf32> to vector<8x128xbf16>
    %8 = arith.extf %7 : vector<8x128xbf16> to vector<8x128xf32>
    %9 = arith.subf %6, %8 : vector<8x128xf32>
    %10 = arith.truncf %9 : vector<8x128xf32> to vector<8x128xbf16>
    %cst = arith.constant dense<0.000000e+00> : vector<8x128xf32>
    %11 = tpu.matmul %2, %1, %cst {dimension_numbers = #tpu.dot_dimension_numbers<[1], [0], [0], [1], [0, 0, 1, 1], [], []>} : vector<8x128xbf16>, vector<128x128xbf16>, vector<8x128xf32> -> vector<8x128xf32>
    %cst_3 = arith.constant dense<0.000000e+00> : vector<8x128xf32>
    %12 = tpu.matmul %5, %1, %cst_3 {dimension_numbers = #tpu.dot_dimension_numbers<[1], [0], [0], [1], [0, 0, 1, 1], [], []>} : vector<8x128xbf16>, vector<128x128xbf16>, vector<8x128xf32> -> vector<8x128xf32>
    %13 = arith.addf %11, %12 : vector<8x128xf32>
    %cst_4 = arith.constant dense<0.000000e+00> : vector<8x128xf32>
    %14 = tpu.matmul %7, %1, %cst_4 {dimension_numbers = #tpu.dot_dimension_numbers<[1], [0], [0], [1], [0, 0, 1, 1], [], []>} : vector<8x128xbf16>, vector<128x128xbf16>, vector<8x128xf32> -> vector<8x128xf32>
    %cst_5 = arith.constant dense<0.000000e+00> : vector<8x128xf32>
    %15 = tpu.matmul %10, %1, %cst_5 {dimension_numbers = #tpu.dot_dimension_numbers<[1], [0], [0], [1], [0, 0, 1, 1], [], []>} : vector<8x128xbf16>, vector<128x128xbf16>, vector<8x128xf32> -> vector<8x128xf32>
    %16 = arith.addf %14, %15 : vector<8x128xf32>
    %cst_6 = arith.constant 3.125000e-02 : f32
    %17 = vector.broadcast %cst_6 : f32 to vector<8x128xf32>
    %18 = arith.mulf %13, %17 : vector<8x128xf32>
    %cst_7 = arith.constant 3.125000e-02 : f32
    %19 = vector.broadcast %cst_7 : f32 to vector<8x128xf32>
    %20 = arith.mulf %16, %19 : vector<8x128xf32>
    %21 = arith.mulf %18, %18 : vector<8x128xf32>
    %22 = arith.subf %20, %21 : vector<8x128xf32>
    %cst_8 = arith.constant 0.000000e+00 : f32
    %23 = vector.broadcast %cst_8 : f32 to vector<8x128xf32>
    %24 = arith.maximumf %22, %23 : vector<8x128xf32>
    %cst_9 = arith.constant 9.99999974E-6 : f32
    %25 = vector.broadcast %cst_9 : f32 to vector<8x128xf32>
    %26 = arith.addf %24, %25 : vector<8x128xf32>
    %27 = math.rsqrt %26 : vector<8x128xf32>
    %28 = arith.subf %0, %18 : vector<8x128xf32>
    %29 = arith.mulf %28, %27 : vector<8x128xf32>
    %c0_10 = arith.constant 0 : index
    %c0_11 = arith.constant 0 : index
    %30 = vector.load %arg3[%c0_10, %c0_11] : memref<1x128xf32, #tpu.memory_space<vmem>>, vector<1x128xf32>
    %c0_12 = arith.constant 0 : index
    %c0_13 = arith.constant 0 : index
    %31 = vector.load %arg2[%c0_12, %c0_13] : memref<1x128xf32, #tpu.memory_space<vmem>>, vector<1x128xf32>
    %32 = vector.broadcast %31 : vector<1x128xf32> to vector<8x128xf32>
    %33 = arith.mulf %32, %29 : vector<8x128xf32>
    %34 = vector.broadcast %30 : vector<1x128xf32> to vector<8x128xf32>
    %35 = arith.addf %34, %33 : vector<8x128xf32>
    %c0_14 = arith.constant 0 : index
    %c0_15 = arith.constant 0 : index
    %36 = vector.load %arg5[%c0_14, %c0_15] : memref<8x128xf32, #tpu.memory_space<vmem>>, vector<8x128xf32>
    tpu.vector_store %arg5[%c0_14, %c0_15], %35 {strides = array<i32>} : memref<8x128xf32, #tpu.memory_space<vmem>>, vector<8x128xf32>,
    return
  }
  func.func @transform_0(%arg0: i32) -> (i32, i32) {
    %c0_i32 = arith.constant 0 : i32
    %c0_i32_0 = arith.constant 0 : i32
    return %arg0, %c0_i32 : i32, i32
  }
  func.func @transform_1(%arg0: i32) -> (i32, i32) {
    %c0_i32 = arith.constant 0 : i32
    %c0_i32_0 = arith.constant 0 : i32
    %c0_i32_1 = arith.constant 0 : i32
    return %c0_i32, %c0_i32_0 : i32, i32
  }
  func.func @transform_2(%arg0: i32) -> (i32, i32) {
    %c0_i32 = arith.constant 0 : i32
    %c0_i32_0 = arith.constant 0 : i32
    %c0_i32_1 = arith.constant 0 : i32
    return %c0_i32, %c0_i32_0 : i32, i32
  }
  func.func @transform_3(%arg0: i32) -> (i32, i32) {
    %c0_i32 = arith.constant 0 : i32
    %c0_i32_0 = arith.constant 0 : i32
    %c0_i32_1 = arith.constant 0 : i32
    return %c0_i32, %c0_i32_0 : i32, i32
  }
  func.func @transform_4(%arg0: i32) -> (i32, i32) {
    %c0_i32 = arith.constant 0 : i32
    %c0_i32_0 = arith.constant 0 : i32
    return %arg0, %c0_i32 : i32, i32
  }
}

</mosaic_0001>

<llo_original>
// kernel: tpu_custom_call.1
$region0: #{tpu_custom_call.1}
  #allocation0 [shape = 'u32[]', space=smem, size = 0x4, offset = 0x4, fixed_abs, tag = 'smem constant byte address 0x4 - core index']
  #allocation1 [shape = 'u32[72,128]{1,0:T(1,128)}', space=vmem, size = 0x9000, scoped, tag = 'internal scratch']
  %s0 = inlined_call_operand.hbm [shape: f32[8,128], index: 0, kind: input, shape index: {}]
  %s1 = inlined_call_operand.hbm [shape: f32[1,128], index: 1, kind: input, shape index: {}]
  %s2 = inlined_call_operand.vmem [shape: f32[1,128], index: 2, kind: input, shape index: {}]
  %s3 = inlined_call_operand.hbm [shape: bf16[128,128], index: 3, kind: input, shape index: {}]
  %s4 = inlined_call_operand.hbm [shape: f32[8,128], index: 4, kind: output, shape index: {}]
  %s5 = sld [smem:[#allocation0]]
  $region38: #{tpu_custom_call.1} parent=0
    _
  %s7 = ssub.s32 1, %s5
  %s8 = scalar_select 0, %s7, %s5
  $region1: #{tpu_custom_call.1} parent=0
    #allocation2 [shape = 'u8[4096]{0}', space=vmem, size = 0x1000, scoped, tag = 'input window, operand 0, single buffered']
    #allocation3 [shape = 's32[1]{0}', space=sflag, size = 0x4, scoped, tag = 'scoped memory for tpu_custom_call.1']
    #allocation4 [shape = 's32[1]{0}', space=sflag, size = 0x4, scoped, tag = 'scoped memory for tpu_custom_call.1']
    #allocation5 [shape = 'u8[512]{0}', space=vmem, size = 0x400, scoped, tag = 'input window, operand 1, single buffered']
    #allocation6 [shape = 's32[1]{0}', space=sflag, size = 0x4, scoped, tag = 'scoped memory for tpu_custom_call.1']
    #allocation7 [shape = 'u8[32768]{0}', space=vmem, size = 0x8000, scoped, tag = 'input window, operand 3, single buffered']
    #allocation8 [shape = 'u8[4096]{0}', space=vmem, size = 0x1000, scoped, tag = 'output window, operand 0, single buffered']
    %9 = vsyncpa [#allocation3], 0
    %10 = vsyncpa [#allocation6], 0
    %11 = vsyncpa [#allocation4], 0
    // Predicated region
    $region2: #{tpu_custom_call.1} parent=1 // pred_check
      _
    $region3: #{tpu_custom_call.1} parent=1 // pred_check_branch
      %13 = sbr.rel (0) target = $region5
    $region4: #{tpu_custom_call.1} parent=1 // pred_region
      %15 = vsyncadd [#allocation3], 0
      %s17 = sshll.u32 %s0, 4
      %s18 = int_to_ptr.hbm [resolvable:$true] %s17
      %s19 = sshll.u32 [#allocation2], 4
      %s20 = int_to_ptr.vmem [resolvable:$true] %s19
      %22 = dma.hbm_to_vmem [thread:$0]  %s18, 128, %s20, [#allocation3]
    $region5: #{tpu_custom_call.1} parent=1 // pred_fallthru
      _
    // Predicated region
    $region6: #{tpu_custom_call.1} parent=1 // pred_check
      _
    $region7: #{tpu_custom_call.1} parent=1 // pred_check_branch
      %24 = sbr.rel (0) target = $region9
    $region8: #{tpu_custom_call.1} parent=1 // pred_region
      %26 = vsyncadd [#allocation6], 0
      %s28 = sshll.u32 %s1, 4
      %s29 = int_to_ptr.hbm [resolvable:$true] %s28
      %s30 = sshll.u32 [#allocation5], 4
      %s31 = int_to_ptr.vmem [resolvable:$true] %s30
      %33 = dma.hbm_to_vmem [thread:$0]  %s29, 16, %s31, [#allocation6]
    $region9: #{tpu_custom_call.1} parent=1 // pred_fallthru
      _
    // Predicated region
    $region10: #{tpu_custom_call.1} parent=1 // pred_check
      _
    $region11: #{tpu_custom_call.1} parent=1 // pred_check_branch
      %35 = sbr.rel (0) target = $region13
    $region12: #{tpu_custom_call.1} parent=1 // pred_region
      _
    $region13: #{tpu_custom_call.1} parent=1 // pred_fallthru
      _
    // Predicated region
    $region14: #{tpu_custom_call.1} parent=1 // pred_check
      _
    $region15: #{tpu_custom_call.1} parent=1 // pred_check_branch
      %37 = sbr.rel (0) target = $region17
    $region16: #{tpu_custom_call.1} parent=1 // pred_region
      %39 = vsyncadd [#allocation6], 0
      %s40 = sshll.u32 %s3, 4
      %s41 = int_to_ptr.hbm [resolvable:$true] %s40
      %s42 = sshll.u32 [#allocation7], 4
      %s43 = int_to_ptr.vmem [resolvable:$true] %s42
      %48 = dma.hbm_to_vmem [thread:$0]  %s41, 1024, %s43, [#allocation6], 64, 64, 4
    $region17: #{tpu_custom_call.1} parent=1 // pred_fallthru
      _
    // Predicated region
    $region18: #{tpu_custom_call.1} parent=1 // pred_check
      _
    $region19: #{tpu_custom_call.1} parent=1 // pred_check_branch
      %50 = sbr.rel (0) target = $region21
    $region20: #{tpu_custom_call.1} parent=1 // pred_region
      %52 = dma.done [#allocation3], 128
    $region21: #{tpu_custom_call.1} parent=1 // pred_fallthru
      _
    // Predicated region
    $region22: #{tpu_custom_call.1} parent=1 // pred_check
      _
    $region23: #{tpu_custom_call.1} parent=1 // pred_check_branch
      %54 = sbr.rel (0) target = $region25
    $region24: #{tpu_custom_call.1} parent=1 // pred_region
      %56 = dma.done [#allocation6], 16
    $region25: #{tpu_custom_call.1} parent=1 // pred_fallthru
      _
    // Predicated region
    $region26: #{tpu_custom_call.1} parent=1 // pred_check
      _
    $region27: #{tpu_custom_call.1} parent=1 // pred_check_branch
      %58 = sbr.rel (0) target = $region29
    $region28: #{tpu_custom_call.1} parent=1 // pred_region
      %60 = dma.done [#allocation6], 1024
    $region29: #{tpu_custom_call.1} parent=1 // pred_fallthru
      _
    %v61 = vld [vmem:[#allocation2] sm:$0xff]
    %v62 = vld [vmem:[#allocation7] sm:$0xf]
    %v63 = vld [vmem:[#allocation7 + $0x4] sm:$0xf]
    %v64 = vld [vmem:[#allocation7 + $0x8] sm:$0xf]
    %v65 = vld [vmem:[#allocation7 + $0xc] sm:$0xf]
    %v66 = vld [vmem:[#allocation7 + $0x10] sm:$0xf]
    %v67 = vld [vmem:[#allocation7 + $0x14] sm:$0xf]
    %v68 = vld [vmem:[#allocation7 + $0x18] sm:$0xf]
    %v69 = vld [vmem:[#allocation7 + $0x1c] sm:$0xf]
    %v70 = vld [vmem:[#allocation7 + $0x20] sm:$0xf]
    %v71 = vld [vmem:[#allocation7 + $0x24] sm:$0xf]
    %v72 = vld [vmem:[#allocation7 + $0x28] sm:$0xf]
    %v73 = vld [vmem:[#allocation7 + $0x2c] sm:$0xf]
    %v74 = vld [vmem:[#allocation7 + $0x30] sm:$0xf]
    %v75 = vld [vmem:[#allocation7 + $0x34] sm:$0xf]
    %v76 = vld [vmem:[#allocation7 + $0x38] sm:$0xf]
    %v77 = vld [vmem:[#allocation7 + $0x3c] sm:$0xf]
    %v78 = vpack.c.bf16 %v61, %v61
    %v79 = vunpack.c.l.bf16 %v78
    %v80 = vsub.f32 %v61, %v79
    %v81 = vpack.c.bf16 %v80, %v80
    %v82 = vmul.f32 %v61, %v61
    %v83 = vpack.c.bf16 %v82, %v82
    %v84 = vunpack.c.l.bf16 %v83
    %v85 = vsub.f32 %v82, %v84
    %v86 = vpack.c.bf16 %v85, %v85
    %v103 = vunpack.c.l.b16 %v62
    %v104 = vunpack.c.l.b16 %v63
    %v105 = vunpack.c.l.b16 %v64
    %v106 = vunpack.c.l.b16 %v65
    %v107 = vunpack.c.l.b16 %v66
    %v108 = vunpack.c.l.b16 %v67
    %v109 = vunpack.c.l.b16 %v68
    %v110 = vunpack.c.l.b16 %v69
    %v111 = vunpack.c.l.b16 %v70
    %v112 = vunpack.c.l.b16 %v71
    %v113 = vunpack.c.l.b16 %v72
    %v114 = vunpack.c.l.b16 %v73
    %v115 = vunpack.c.l.b16 %v74
    %v116 = vunpack.c.l.b16 %v75
    %v117 = vunpack.c.l.b16 %v76
    %v118 = vunpack.c.l.b16 %v77
    %v119 = vpack.c.b16 %v104, %v103
    %v120 = vpack.c.b16 %v106, %v105
    %v121 = vpack.c.b16 %v108, %v107
    %v122 = vpack.c.b16 %v110, %v109
    %v123 = vpack.c.b16 %v112, %v111
    %v124 = vpack.c.b16 %v114, %v113
    %v125 = vpack.c.b16 %v116, %v115
    %v126 = vpack.c.b16 %v118, %v117
    %135 = vmatpush.bf16.msra.mxu0 %v126
    %136 = vmatpush.bf16.msra.mxu0 %v125
    %137 = vmatpush.bf16.msra.mxu0 %v124
    %138 = vmatpush.bf16.msra.mxu0 %v123
    %139 = vmatpush.bf16.msra.mxu0 %v122
    %140 = vmatpush.bf16.msra.mxu0 %v121
    %141 = vmatpush.bf16.msra.mxu0 %v120
    %142 = vmatpush.bf16.msra.mxu0 %v119
    %143 = vmatmul.bf16.gmra.mxu0 %v81
    %v144 = vpop.f32.mrf.mxu0
    %v145 = vadd.f32 0.0, %v144
    %v146 = vpop.f32.mrf.mxu0
    %147 = vdwg.mxu0
    %148 = vmatpush.bf16.msra.mxu0 %v126
    %149 = vmatpush.bf16.msra.mxu0 %v125
    %150 = vmatpush.bf16.msra.mxu0 %v124
    %151 = vmatpush.bf16.msra.mxu0 %v123
    %152 = vmatpush.bf16.msra.mxu0 %v122
    %153 = vmatpush.bf16.msra.mxu0 %v121
    %154 = vmatpush.bf16.msra.mxu0 %v120
    %155 = vmatpush.bf16.msra.mxu0 %v119
    %156 = vmatmul.bf16.gmra.mxu0 %v78
    %v157 = vpop.f32.mrf.mxu0
    %v158 = vadd.f32 %v145, %v157
    %v159 = vpop.f32.mrf.mxu0
    %160 = vdwg.mxu0
    %161 = vmatpush.bf16.msra.mxu0 %v126
    %162 = vmatpush.bf16.msra.mxu0 %v125
    %163 = vmatpush.bf16.msra.mxu0 %v124
    %164 = vmatpush.bf16.msra.mxu0 %v123
    %165 = vmatpush.bf16.msra.mxu0 %v122
    %166 = vmatpush.bf16.msra.mxu0 %v121
    %167 = vmatpush.bf16.msra.mxu0 %v120
    %168 = vmatpush.bf16.msra.mxu0 %v119
    %169 = vmatmul.bf16.gmra.mxu0 %v86
    %v170 = vpop.f32.mrf.mxu0
    %v171 = vadd.f32 0.0, %v170
    %v172 = vpop.f32.mrf.mxu0
    %173 = vdwg.mxu0
    %174 = vmatpush.bf16.msra.mxu0 %v126
    %175 = vmatpush.bf16.msra.mxu0 %v125
    %176 = vmatpush.bf16.msra.mxu0 %v124
    %177 = vmatpush.bf16.msra.mxu0 %v123
    %178 = vmatpush.bf16.msra.mxu0 %v122
    %179 = vmatpush.bf16.msra.mxu0 %v121
    %180 = vmatpush.bf16.msra.mxu0 %v120
    %181 = vmatpush.bf16.msra.mxu0 %v119
    %182 = vmatmul.bf16.gmra.mxu0 %v83
    %v183 = vpop.f32.mrf.mxu0
    %v184 = vadd.f32 %v171, %v183
    %v185 = vpop.f32.mrf.mxu0
    %186 = vdwg.mxu0
    %v187 = vmul.f32 %v158, 0.03125
    %v188 = vmul.f32 %v184, 0.03125
    %v189 = vmul.f32 %v187, %v187
    %v190 = vsub.f32 %v188, %v189
    %v191 = vmax.f32 %v190, 0.0
    %v192 = vadd.f32 %v191, 1e-05
    %v193 = vrsqrt.pop %v192
    %v194 = vmul.f32 %v193, %v192
    %v195 = vmul.f32 %v194, %v193
    %v196 = vmul.f32 0.5, %v195
    %v197 = vsub.f32 1.5, %v196
    %v198 = vmul.f32 %v193, %v197
    %vm199 = vweird.f32 %v192
    %vm200 = vweird.f32 %v193
    %vm201 = vmor %vm199, %vm200
    %v202 = vsel %vm201, %v193, %v198
    %v203 = vsub.f32 %v61, %v187
    %v204 = vmul.f32 %v203, %v202
    %v205 = vld [vmem:[%s2] sm:$0x1]
    %v206 = vld [vmem:[#allocation5] sm:$0x1]
    %v208 = vperm.slane %v206, 0
    %v210 = vmul.f32 %v208, %v204
    %v212 = vperm.slane %v205, 0
    %v214 = vadd.f32 %v212, %v210
    %215 = vst [vmem:[#allocation8] sm:$0xff] %v214
    // Predicated region
    $region30: #{tpu_custom_call.1} parent=1 // pred_check
      _
    $region31: #{tpu_custom_call.1} parent=1 // pred_check_branch
      %217 = sbr.rel (0) target = $region33
    $region32: #{tpu_custom_call.1} parent=1 // pred_region
      %219 = vsyncadd [#allocation4], 0
      %s221 = sshll.u32 [#allocation8], 4
      %s222 = int_to_ptr.vmem [resolvable:$true] %s221
      %s223 = sshll.u32 %s4, 4
      %s224 = int_to_ptr.hbm [resolvable:$true] %s223
      %226 = dma.vmem_to_hbm [thread:$0]  %s222, 128, %s224, [#allocation4]
    $region33: #{tpu_custom_call.1} parent=1 // pred_fallthru
      _
    // Predicated region
    $region34: #{tpu_custom_call.1} parent=1 // pred_check
      _
    $region35: #{tpu_custom_call.1} parent=1 // pred_check_branch
      %228 = sbr.rel (0) target = $region37
    $region36: #{tpu_custom_call.1} parent=1 // pred_region
      %230 = dma.done [#allocation4], 128
    $region37: #{tpu_custom_call.1} parent=1 // pred_fallthru
      _
    %231 = vsyncpa [#allocation3], 1
    %232 = vsyncpa [#allocation6], 1
    %233 = vsyncpa [#allocation4], 1

</llo_original>
